<compile_context>
chip_gen: v7x
topology: tpu7x:2x2x1
jax: 0.10.0
libtpu: 0.0.40
codegen_flags: <defaults>
</compile_context>

<pallas_src>
import functools

import jax
import jax.numpy as jnp
import numpy as np
from jax.experimental import pallas as pl
from jax.experimental.pallas import tpu as pltpu


def _round_up(x, m):
    return ((x + m - 1) // m) * m


def cnn_nlp_kernel(max_k, sum_f_pad, x_ref, wcat_ref, bcat_ref, mask_ref,
                   wfc_ref, bfc_ref, o_ref, conv_ref):
    """Fused conv1d -> ReLU -> global max-pool -> linear for TB batch rows.

    x_ref   : (TB, L, E)              activations (producer dtype; cast here)
    wcat_ref: (E, max_k*sum_f_pad)    k-major packed conv taps (bf16),
                                      zero columns where k >= K_i
    bcat_ref: (1, sum_f_pad)          conv biases, zero-padded (f32)
    mask_ref: (L, sum_f_pad)          1.0 where t < L-K_i+1 else 0.0 (f32)
    wfc_ref : (sum_f_pad, C_pad)      fc weight, zero-padded (bf16)
    bfc_ref : (1, C_pad)              fc bias, zero-padded (f32)
    o_ref   : (TB, C_pad)             logits (f32)
    conv_ref: (TB, L, sum_f_pad)      f32 VMEM scratch (conv accumulator)
    """
    TB, L, E = x_ref.shape
    x2d = x_ref[...].astype(wcat_ref.dtype).reshape(TB * L, E)

    # Conv as max_k lane-aligned tap matmuls accumulated with sublane shifts:
    #   conv[b, t, f] = sum_k x[b, t+k, :] @ W_f[:, k]
    # Tap-k columns are zero for filters with K_i <= k, and positions
    # t >= L - K_i + 1 are masked out below, so the shared buffer is exact for
    # every valid (t, f).
    for k in range(max_k):
        yk = jnp.dot(x2d, wcat_ref[:, k * sum_f_pad:(k + 1) * sum_f_pad],
                     preferred_element_type=jnp.float32)
        yk = yk.reshape(TB, L, sum_f_pad)
        if k == 0:
            conv_ref[...] = yk
        else:
            conv_ref[:, 0:L - k, :] = conv_ref[:, 0:L - k, :] + yk[:, k:L, :]

    # Bias + ReLU + masked global max-pool (ReLU >= 0, so zeroed invalid
    # positions never win the max).
    act = jnp.maximum(conv_ref[...] + bcat_ref[...][None, :, :], 0.0)
    act = act * mask_ref[...][None, :, :]
    pooled = jnp.max(act, axis=1)                       # (TB, sum_f_pad) f32

    # TODO(synk): dropout is stochastic in train mode; eval-mode identity here.
    logits = jnp.dot(pooled.astype(wfc_ref.dtype), wfc_ref[...],
                     preferred_element_type=jnp.float32) + bfc_ref[...]
    o_ref[...] = logits.astype(o_ref.dtype)


def _choose_block_b(B, L, E, x_itemsize, max_k, sum_f_pad, c_pad):
    """Batch block size from a DMA row target + an explicit VMEM budget."""
    # DMA efficiency: per-step x tile of roughly 0.5-2 MB (M = block_b*L ~ 4096).
    bb = max(1, 4096 // max(L, 1))
    # Explicit ~24 MiB VMEM budget: safe on v5e/v6e (128 MiB physical) and on
    # v7x (64 MiB per TensorCore), and below the vmem_limit_bytes set below.
    per_row = (2 * L * E * x_itemsize            # double-buffered x block
               + L * E * 2                       # bf16 cast of the x block
               + 4 * L * sum_f_pad * 4           # conv scratch + per-tap/relu temps
               + 2 * c_pad * 4)                  # double-buffered logits block
    fixed = (2 * (E * max_k * sum_f_pad + sum_f_pad * c_pad) * 2   # weights (x2 bufs)
             + L * sum_f_pad * 4 + (1 << 20))                      # mask + slack
    budget = 24 * 1024 * 1024
    bb = min(bb, max(1, (budget - fixed) // per_row))
    bb = int(min(bb, B))
    if B >= 16:
        bb = min(bb, (B + 1) // 2)   # >= 2 grid steps so v7x megacore can split
    # Prefer an exact divisor of B (no wrapper pad pass over x); among those,
    # prefer a multiple of 8 (clean sublane tiling for the logits block).
    best = None
    for cand in range(bb, 0, -1):
        if B % cand == 0 and 4 * cand >= bb:
            if cand % 8 == 0 or cand == B:
                return cand
            if best is None:
                best = cand
    if best is not None:
        return best
    return bb    # no reasonable divisor: caller pads the batch tail


def cnn_nlp_forward(x, torch_conv_ws, torch_conv_bs, torch_fc_w, torch_fc_b,
                    *, block_b=None, compute_dtype=jnp.bfloat16):
    """x: (B, L, E) — the PyTorch input *before* .permute(0, 2, 1).

    torch_conv_ws[i]: (F_i, E, K_i)   PyTorch Conv1d weight layout
    torch_conv_bs[i]: (F_i,)
    torch_fc_w      : (C, sum F_i)    PyTorch Linear weight layout
    torch_fc_b      : (C,)
    Returns logits (B, C) float32.
    """
    B, L, E = x.shape
    filter_sizes = tuple(int(w.shape[2]) for w in torch_conv_ws)
    num_filters = tuple(int(w.shape[0]) for w in torch_conv_ws)
    C = int(torch_fc_w.shape[0])
    sum_f = int(sum(num_filters))
    sum_f_pad = _round_up(sum_f, 128)
    c_pad = _round_up(C, 128)
    max_k = int(max(filter_sizes))
    assert L >= max_k, "sequence length must be >= the largest filter size"

    # --- pack parameters into lane-dense, k-major layouts (host-side, one-off)
    tap_blocks = []
    for k in range(max_k):
        cols = []
        for Ki, Fi, w in zip(filter_sizes, num_filters, torch_conv_ws):
            if k < Ki:
                cols.append(jnp.transpose(w[:, :, k]).astype(jnp.float32))  # (E, Fi)
            else:
                cols.append(jnp.zeros((E, Fi), jnp.float32))
        cols.append(jnp.zeros((E, sum_f_pad - sum_f), jnp.float32))
        tap_blocks.append(jnp.concatenate(cols, axis=1))                    # (E, sumF_pad)
    w_cat = jnp.concatenate(tap_blocks, axis=1).astype(compute_dtype)       # (E, maxK*sumF_pad)

    b_cat = jnp.zeros((1, sum_f_pad), jnp.float32).at[0, :sum_f].set(
        jnp.concatenate([b.astype(jnp.float32) for b in torch_conv_bs]))

    mask_np = np.zeros((L, sum_f_pad), np.float32)
    col = 0
    for Ki, Fi in zip(filter_sizes, num_filters):
        mask_np[:L - Ki + 1, col:col + Fi] = 1.0
        col += Fi
    mask = jnp.asarray(mask_np)

    wfc = jnp.zeros((sum_f_pad, c_pad), compute_dtype).at[:sum_f, :C].set(
        jnp.transpose(torch_fc_w).astype(compute_dtype))
    bfc = jnp.zeros((1, c_pad), jnp.float32).at[0, :C].set(
        torch_fc_b.astype(jnp.float32))

    # --- batch-block the grid ------------------------------------------------
    if block_b is None:
        block_b = _choose_block_b(B, L, E, x.dtype.itemsize, max_k,
                                  sum_f_pad, c_pad)
    n_blocks = pl.cdiv(B, block_b)
    B_pad = n_blocks * block_b
    x_in = x                       # producer dtype; cast to bf16 inside kernel
    if B_pad != B:                 # rare: only when no reasonable divisor of B
        x_in = jnp.pad(x, ((0, B_pad - B), (0, 0), (0, 0)))

    kernel = functools.partial(cnn_nlp_kernel, max_k, sum_f_pad)
    out = pl.pallas_call(
        kernel,
        out_shape=jax.ShapeDtypeStruct((B_pad, c_pad), jnp.float32),
        grid=(n_blocks,),
        in_specs=[
            pl.BlockSpec((block_b, L, E), lambda b: (b, 0, 0)),
            pl.BlockSpec(w_cat.shape, lambda b: (0, 0)),
            pl.BlockSpec(b_cat.shape, lambda b: (0, 0)),
            pl.BlockSpec(mask.shape, lambda b: (0, 0)),
            pl.BlockSpec(wfc.shape, lambda b: (0, 0)),
            pl.BlockSpec(bfc.shape, lambda b: (0, 0)),
        ],
        out_specs=pl.BlockSpec((block_b, c_pad), lambda b: (b, 0)),
        scratch_shapes=[pltpu.VMEM((block_b, L, sum_f_pad), jnp.float32)],
        compiler_params=pltpu.CompilerParams(
            dimension_semantics=("parallel",),
            vmem_limit_bytes=48 * 1024 * 1024),
    )(x_in, w_cat, b_cat, mask, wfc, bfc)
    return out[:B, :C]


def reference_forward(x, torch_conv_ws, torch_conv_bs, torch_fc_w, torch_fc_b):
    """Pure-JAX f32 reference mirroring the PyTorch forward (eval-mode dropout)."""
    B, L, E = x.shape
    feats = []
    for w, b in zip(torch_conv_ws, torch_conv_bs):   # w: (F, E, K) torch layout
        F_, _, K = w.shape
        Lout = L - K + 1
        windows = jnp.stack([x[:, t:t + K, :] for t in range(Lout)], axis=1)  # (B,Lout,K,E)
        conv = jnp.einsum('blke,fek->blf', windows, w) + b[None, None, :]
        feats.append(jnp.max(jax.nn.relu(conv), axis=1))                      # (B, F)
    f = jnp.concatenate(feats, axis=1)                                        # (B, sumF)
    return f @ torch_fc_w.T + torch_fc_b[None, :]                             # (B, C)


if __name__ == "__main__":
    # Small shapes consistent with the module: embed_dim=32, filter_sizes=[3,4,5],
    # num_filters=[8,8,8], num_classes=4, batch=2, seq_len=16.
    B, L, E = 2, 16, 32
    filter_sizes = [3, 4, 5]
    num_filters = [8, 8, 8]
    C = 4
    tot_f = int(np.sum(num_filters))

    key = jax.random.PRNGKey(0)
    keys = jax.random.split(key, 2 * len(filter_sizes) + 3)

    x = jax.random.normal(keys[0], (B, L, E), dtype=jnp.float32)

    torch_conv_ws, torch_conv_bs = [], []
    for i, (K, F_) in enumerate(zip(filter_sizes, num_filters)):
        # PyTorch Conv1d weight layout: (out_channels, in_channels, kernel_size)
        torch_conv_ws.append(
            0.1 * jax.random.normal(keys[1 + 2 * i], (F_, E, K), dtype=jnp.float32))
        torch_conv_bs.append(
            0.1 * jax.random.normal(keys[2 + 2 * i], (F_,), dtype=jnp.float32))
    # PyTorch Linear weight layout: (num_classes, sum(num_filters))
    torch_fc_w = 0.1 * jax.random.normal(keys[-2], (C, tot_f), dtype=jnp.float32)
    torch_fc_b = 0.1 * jax.random.normal(keys[-1], (C,), dtype=jnp.float32)

    logits = cnn_nlp_forward(x, torch_conv_ws, torch_conv_bs,
                             torch_fc_w, torch_fc_b)
    logits = jax.block_until_ready(logits)

    ref = reference_forward(x, torch_conv_ws, torch_conv_bs, torch_fc_w, torch_fc_b)
    # bf16 matmul operands with f32 accumulation -> loosened tolerance.
    np.testing.assert_allclose(np.asarray(logits), np.asarray(ref),
                               rtol=2e-2, atol=2e-2)
    print("KERNEL_OK")
</pallas_src>

<mosaic_0001>
module attributes {stable_mosaic.version = 11 : i64} {
  func.func @cnn_nlp_kernel(%arg0: i32, %arg1: memref<2x16x32xf32, #tpu.memory_space<vmem>>, %arg2: memref<32x640xbf16, #tpu.memory_space<vmem>>, %arg3: memref<1x128xf32, #tpu.memory_space<vmem>>, %arg4: memref<16x128xf32, #tpu.memory_space<vmem>>, %arg5: memref<128x128xbf16, #tpu.memory_space<vmem>>, %arg6: memref<1x128xf32, #tpu.memory_space<vmem>>, %arg7: memref<2x128xf32, #tpu.memory_space<vmem>>, %arg8: memref<2x16x128xf32, #tpu.memory_space<vmem>>) attributes {dimension_semantics = [#tpu.dimension_semantics<parallel>], iteration_bounds = array<i64: 1>, scalar_prefetch = 0 : i64, scratch_operands = 1 : i64, tpu.core_type = #tpu.core_type<tc>, window_params = [{transform_indices = @transform_0, window_bounds = array<i64: 2, 16, 32>}, {pipeline_mode = #tpu.pipeline_mode<synchronous>, transform_indices = @transform_1, window_bounds = array<i64: 32, 640>}, {pipeline_mode = #tpu.pipeline_mode<synchronous>, transform_indices = @transform_2, window_bounds = array<i64: 1, 128>}, {pipeline_mode = #tpu.pipeline_mode<synchronous>, transform_indices = @transform_3, window_bounds = array<i64: 16, 128>}, {pipeline_mode = #tpu.pipeline_mode<synchronous>, transform_indices = @transform_4, window_bounds = array<i64: 128, 128>}, {pipeline_mode = #tpu.pipeline_mode<synchronous>, transform_indices = @transform_5, window_bounds = array<i64: 1, 128>}, {transform_indices = @transform_6, window_bounds = array<i64: 2, 128>}]} {
    %c0 = arith.constant 0 : index
    %c0_0 = arith.constant 0 : index
    %c0_1 = arith.constant 0 : index
    %0 = vector.load %arg1[%c0, %c0_0, %c0_1] : memref<2x16x32xf32, #tpu.memory_space<vmem>>, vector<2x16x32xf32>
    %1 = arith.truncf %0 : vector<2x16x32xf32> to vector<2x16x32xbf16>
    %2 = vector.shape_cast %1 : vector<2x16x32xbf16> to vector<32x32xbf16>
    %c0_2 = arith.constant 0 : index
    %c0_3 = arith.constant 0 : index
    %3 = vector.load %arg2[%c0_2, %c0_3] : memref<32x640xbf16, #tpu.memory_space<vmem>>, vector<32x128xbf16>
    %cst = arith.constant dense<0.000000e+00> : vector<32x128xf32>
    %4 = tpu.matmul %2, %3, %cst {dimension_numbers = #tpu.dot_dimension_numbers<[1], [0], [0], [1], [0, 0, 1, 1], [], []>} : vector<32x32xbf16>, vector<32x128xbf16>, vector<32x128xf32> -> vector<32x128xf32>
    %5 = vector.shape_cast %4 : vector<32x128xf32> to vector<2x16x128xf32>
    %c0_4 = arith.constant 0 : index
    %c0_5 = arith.constant 0 : index
    %c0_6 = arith.constant 0 : index
    %6 = vector.load %arg8[%c0_4, %c0_5, %c0_6] : memref<2x16x128xf32, #tpu.memory_space<vmem>>, vector<2x16x128xf32>
    tpu.vector_store %arg8[%c0_4, %c0_5, %c0_6], %5 {strides = array<i32>} : memref<2x16x128xf32, #tpu.memory_space<vmem>>, vector<2x16x128xf32>,
    %c0_7 = arith.constant 0 : index
    %c128 = arith.constant 128 : index
    %7 = vector.load %arg2[%c0_7, %c128] : memref<32x640xbf16, #tpu.memory_space<vmem>>, vector<32x128xbf16>
    %cst_8 = arith.constant dense<0.000000e+00> : vector<32x128xf32>
    %8 = tpu.matmul %2, %7, %cst_8 {dimension_numbers = #tpu.dot_dimension_numbers<[1], [0], [0], [1], [0, 0, 1, 1], [], []>} : vector<32x32xbf16>, vector<32x128xbf16>, vector<32x128xf32> -> vector<32x128xf32>
    %9 = vector.shape_cast %8 : vector<32x128xf32> to vector<2x16x128xf32>
    %c0_9 = arith.constant 0 : index
    %c0_10 = arith.constant 0 : index
    %c0_11 = arith.constant 0 : index
    %10 = vector.load %arg8[%c0_9, %c0_10, %c0_11] : memref<2x16x128xf32, #tpu.memory_space<vmem>>, vector<2x15x128xf32>
    %11 = vector.extract_strided_slice %9 {offsets = [0, 1, 0], sizes = [2, 15, 128], strides = [1, 1, 1]} : vector<2x16x128xf32> to vector<2x15x128xf32>
    %12 = arith.addf %10, %11 : vector<2x15x128xf32>
    %c0_12 = arith.constant 0 : index
    %c0_13 = arith.constant 0 : index
    %c0_14 = arith.constant 0 : index
    %13 = vector.load %arg8[%c0_12, %c0_13, %c0_14] : memref<2x16x128xf32, #tpu.memory_space<vmem>>, vector<2x15x128xf32>
    tpu.vector_store %arg8[%c0_12, %c0_13, %c0_14], %12 {strides = array<i32>} : memref<2x16x128xf32, #tpu.memory_space<vmem>>, vector<2x15x128xf32>,
    %c0_15 = arith.constant 0 : index
    %c256 = arith.constant 256 : index
    %14 = vector.load %arg2[%c0_15, %c256] : memref<32x640xbf16, #tpu.memory_space<vmem>>, vector<32x128xbf16>
    %cst_16 = arith.constant dense<0.000000e+00> : vector<32x128xf32>
    %15 = tpu.matmul %2, %14, %cst_16 {dimension_numbers = #tpu.dot_dimension_numbers<[1], [0], [0], [1], [0, 0, 1, 1], [], []>} : vector<32x32xbf16>, vector<32x128xbf16>, vector<32x128xf32> -> vector<32x128xf32>
    %16 = vector.shape_cast %15 : vector<32x128xf32> to vector<2x16x128xf32>
    %c0_17 = arith.constant 0 : index
    %c0_18 = arith.constant 0 : index
    %c0_19 = arith.constant 0 : index
    %17 = vector.load %arg8[%c0_17, %c0_18, %c0_19] : memref<2x16x128xf32, #tpu.memory_space<vmem>>, vector<2x14x128xf32>
    %18 = vector.extract_strided_slice %16 {offsets = [0, 2, 0], sizes = [2, 14, 128], strides = [1, 1, 1]} : vector<2x16x128xf32> to vector<2x14x128xf32>
    %19 = arith.addf %17, %18 : vector<2x14x128xf32>
    %c0_20 = arith.constant 0 : index
    %c0_21 = arith.constant 0 : index
    %c0_22 = arith.constant 0 : index
    %20 = vector.load %arg8[%c0_20, %c0_21, %c0_22] : memref<2x16x128xf32, #tpu.memory_space<vmem>>, vector<2x14x128xf32>
    tpu.vector_store %arg8[%c0_20, %c0_21, %c0_22], %19 {strides = array<i32>} : memref<2x16x128xf32, #tpu.memory_space<vmem>>, vector<2x14x128xf32>,
    %c0_23 = arith.constant 0 : index
    %c384 = arith.constant 384 : index
    %21 = vector.load %arg2[%c0_23, %c384] : memref<32x640xbf16, #tpu.memory_space<vmem>>, vector<32x128xbf16>
    %cst_24 = arith.constant dense<0.000000e+00> : vector<32x128xf32>
    %22 = tpu.matmul %2, %21, %cst_24 {dimension_numbers = #tpu.dot_dimension_numbers<[1], [0], [0], [1], [0, 0, 1, 1], [], []>} : vector<32x32xbf16>, vector<32x128xbf16>, vector<32x128xf32> -> vector<32x128xf32>
    %23 = vector.shape_cast %22 : vector<32x128xf32> to vector<2x16x128xf32>
    %c0_25 = arith.constant 0 : index
    %c0_26 = arith.constant 0 : index
    %c0_27 = arith.constant 0 : index
    %24 = vector.load %arg8[%c0_25, %c0_26, %c0_27] : memref<2x16x128xf32, #tpu.memory_space<vmem>>, vector<2x13x128xf32>
    %25 = vector.extract_strided_slice %23 {offsets = [0, 3, 0], sizes = [2, 13, 128], strides = [1, 1, 1]} : vector<2x16x128xf32> to vector<2x13x128xf32>
    %26 = arith.addf %24, %25 : vector<2x13x128xf32>
    %c0_28 = arith.constant 0 : index
    %c0_29 = arith.constant 0 : index
    %c0_30 = arith.constant 0 : index
    %27 = vector.load %arg8[%c0_28, %c0_29, %c0_30] : memref<2x16x128xf32, #tpu.memory_space<vmem>>, vector<2x13x128xf32>
    tpu.vector_store %arg8[%c0_28, %c0_29, %c0_30], %26 {strides = array<i32>} : memref<2x16x128xf32, #tpu.memory_space<vmem>>, vector<2x13x128xf32>,
    %c0_31 = arith.constant 0 : index
    %c512 = arith.constant 512 : index
    %28 = vector.load %arg2[%c0_31, %c512] : memref<32x640xbf16, #tpu.memory_space<vmem>>, vector<32x128xbf16>
    %cst_32 = arith.constant dense<0.000000e+00> : vector<32x128xf32>
    %29 = tpu.matmul %2, %28, %cst_32 {dimension_numbers = #tpu.dot_dimension_numbers<[1], [0], [0], [1], [0, 0, 1, 1], [], []>} : vector<32x32xbf16>, vector<32x128xbf16>, vector<32x128xf32> -> vector<32x128xf32>
    %30 = vector.shape_cast %29 : vector<32x128xf32> to vector<2x16x128xf32>
    %c0_33 = arith.constant 0 : index
    %c0_34 = arith.constant 0 : index
    %c0_35 = arith.constant 0 : index
    %31 = vector.load %arg8[%c0_33, %c0_34, %c0_35] : memref<2x16x128xf32, #tpu.memory_space<vmem>>, vector<2x12x128xf32>
    %32 = vector.extract_strided_slice %30 {offsets = [0, 4, 0], sizes = [2, 12, 128], strides = [1, 1, 1]} : vector<2x16x128xf32> to vector<2x12x128xf32>
    %33 = arith.addf %31, %32 : vector<2x12x128xf32>
    %c0_36 = arith.constant 0 : index
    %c0_37 = arith.constant 0 : index
    %c0_38 = arith.constant 0 : index
    %34 = vector.load %arg8[%c0_36, %c0_37, %c0_38] : memref<2x16x128xf32, #tpu.memory_space<vmem>>, vector<2x12x128xf32>
    tpu.vector_store %arg8[%c0_36, %c0_37, %c0_38], %33 {strides = array<i32>} : memref<2x16x128xf32, #tpu.memory_space<vmem>>, vector<2x12x128xf32>,
    %c0_39 = arith.constant 0 : index
    %c0_40 = arith.constant 0 : index
    %c0_41 = arith.constant 0 : index
    %35 = vector.load %arg8[%c0_39, %c0_40, %c0_41] : memref<2x16x128xf32, #tpu.memory_space<vmem>>, vector<2x16x128xf32>
    %c0_42 = arith.constant 0 : index
    %c0_43 = arith.constant 0 : index
    %36 = vector.load %arg3[%c0_42, %c0_43] : memref<1x128xf32, #tpu.memory_space<vmem>>, vector<1x128xf32>
    %37 = vector.shape_cast %36 : vector<1x128xf32> to vector<1x1x128xf32>
    %38 = vector.broadcast %37 : vector<1x1x128xf32> to vector<2x16x128xf32>
    %39 = arith.addf %35, %38 : vector<2x16x128xf32>
    %cst_44 = arith.constant 0.000000e+00 : f32
    %40 = vector.broadcast %cst_44 : f32 to vector<2x16x128xf32>
    %41 = arith.maximumf %39, %40 : vector<2x16x128xf32>
    %c0_45 = arith.constant 0 : index
    %c0_46 = arith.constant 0 : index
    %42 = vector.load %arg4[%c0_45, %c0_46] : memref<16x128xf32, #tpu.memory_space<vmem>>, vector<16x128xf32>
    %43 = vector.shape_cast %42 : vector<16x128xf32> to vector<1x16x128xf32>
    %44 = vector.broadcast %43 : vector<1x16x128xf32> to vector<2x16x128xf32>
    %45 = arith.mulf %41, %44 : vector<2x16x128xf32>
    %cst_47 = arith.constant dense<0xFF800000> : vector<2x128xf32>
    %46 = vector.multi_reduction <maximumf>, %45, %cst_47 [1] : vector<2x16x128xf32> to vector<2x128xf32>
    %47 = arith.truncf %46 : vector<2x128xf32> to vector<2x128xbf16>
    %c0_48 = arith.constant 0 : index
    %c0_49 = arith.constant 0 : index
    %48 = vector.load %arg5[%c0_48, %c0_49] : memref<128x128xbf16, #tpu.memory_space<vmem>>, vector<128x128xbf16>
    %cst_50 = arith.constant dense<0.000000e+00> : vector<2x128xf32>
    %49 = tpu.matmul %47, %48, %cst_50 {dimension_numbers = #tpu.dot_dimension_numbers<[1], [0], [0], [1], [0, 0, 1, 1], [], []>} : vector<2x128xbf16>, vector<128x128xbf16>, vector<2x128xf32> -> vector<2x128xf32>
    %c0_51 = arith.constant 0 : index
    %c0_52 = arith.constant 0 : index
    %50 = vector.load %arg6[%c0_51, %c0_52] : memref<1x128xf32, #tpu.memory_space<vmem>>, vector<1x128xf32>
    %51 = vector.broadcast %50 : vector<1x128xf32> to vector<2x128xf32>
    %52 = arith.addf %49, %51 : vector<2x128xf32>
    %c0_53 = arith.constant 0 : index
    %c0_54 = arith.constant 0 : index
    %53 = vector.load %arg7[%c0_53, %c0_54] : memref<2x128xf32, #tpu.memory_space<vmem>>, vector<2x128xf32>
    tpu.vector_store %arg7[%c0_53, %c0_54], %52 {strides = array<i32>} : memref<2x128xf32, #tpu.memory_space<vmem>>, vector<2x128xf32>,
    return
  }
  func.func @transform_0(%arg0: i32) -> (i32, i32, i32) {
    %c0_i32 = arith.constant 0 : i32
    %c0_i32_0 = arith.constant 0 : i32
    %c0_i32_1 = arith.constant 0 : i32
    return %arg0, %c0_i32, %c0_i32_0 : i32, i32, i32
  }
  func.func @transform_1(%arg0: i32) -> (i32, i32) {
    %c0_i32 = arith.constant 0 : i32
    %c0_i32_0 = arith.constant 0 : i32
    %c0_i32_1 = arith.constant 0 : i32
    return %c0_i32, %c0_i32_0 : i32, i32
  }
  func.func @transform_2(%arg0: i32) -> (i32, i32) {
    %c0_i32 = arith.constant 0 : i32
    %c0_i32_0 = arith.constant 0 : i32
    %c0_i32_1 = arith.constant 0 : i32
    return %c0_i32, %c0_i32_0 : i32, i32
  }
  func.func @transform_3(%arg0: i32) -> (i32, i32) {
    %c0_i32 = arith.constant 0 : i32
    %c0_i32_0 = arith.constant 0 : i32
    %c0_i32_1 = arith.constant 0 : i32
    return %c0_i32, %c0_i32_0 : i32, i32
  }
  func.func @transform_4(%arg0: i32) -> (i32, i32) {
    %c0_i32 = arith.constant 0 : i32
    %c0_i32_0 = arith.constant 0 : i32
    %c0_i32_1 = arith.constant 0 : i32
    return %c0_i32, %c0_i32_0 : i32, i32
  }
  func.func @transform_5(%arg0: i32) -> (i32, i32) {
    %c0_i32 = arith.constant 0 : i32
    %c0_i32_0 = arith.constant 0 : i32
    %c0_i32_1 = arith.constant 0 : i32
    return %c0_i32, %c0_i32_0 : i32, i32
  }
  func.func @transform_6(%arg0: i32) -> (i32, i32) {
    %c0_i32 = arith.constant 0 : i32
    %c0_i32_0 = arith.constant 0 : i32
    return %arg0, %c0_i32 : i32, i32
  }
}

</mosaic_0001>

<llo_original>
// kernel: tpu_custom_call.1
$region0: #{tpu_custom_call.1}
  #allocation0 [shape = 'u32[]', space=smem, size = 0x4, offset = 0x4, fixed_abs, tag = 'smem constant byte address 0x4 - core index']
  #allocation1 [shape = 'u32[144,128]{1,0:T(1,128)}', space=vmem, size = 0x12000, scoped, tag = 'internal scratch']
  #allocation2 [shape = 'f32[2,16,128]{2,1,0:T(8,128)}', space=vmem, size = 0x4000, scoped, tag = 'scratch operand']
  %s0 = inlined_call_operand.hbm [shape: f32[2,16,32], index: 0, kind: input, shape index: {}]
  %s1 = inlined_call_operand.hbm [shape: bf16[32,640], index: 1, kind: input, shape index: {}]
  %s2 = inlined_call_operand.vmem [shape: f32[1,128], index: 2, kind: input, shape index: {}]
  %s3 = inlined_call_operand.hbm [shape: f32[16,128], index: 3, kind: input, shape index: {}]
  %s4 = inlined_call_operand.hbm [shape: bf16[128,128], index: 4, kind: input, shape index: {}]
  %s5 = inlined_call_operand.vmem [shape: f32[1,128], index: 5, kind: input, shape index: {}]
  %s6 = inlined_call_operand.hbm [shape: f32[2,128], index: 6, kind: output, shape index: {}]
  %s7 = sld [smem:[#allocation0]]
  $region50: #{tpu_custom_call.1} parent=0
    _
  %s9 = ssub.s32 1, %s7
  %s10 = scalar_select 0, %s9, %s7
  $region1: #{tpu_custom_call.1} parent=0
    #allocation3 [shape = 'u8[16384]{0}', space=vmem, size = 0x4000, scoped, tag = 'input window, operand 0, single buffered']
    #allocation4 [shape = 's32[1]{0}', space=sflag, size = 0x4, scoped, tag = 'scoped memory for tpu_custom_call.1']
    #allocation5 [shape = 's32[1]{0}', space=sflag, size = 0x4, scoped, tag = 'scoped memory for tpu_custom_call.1']
    #allocation6 [shape = 'u8[40960]{0}', space=vmem, size = 0xa000, scoped, tag = 'input window, operand 1, single buffered']
    #allocation7 [shape = 's32[1]{0}', space=sflag, size = 0x4, scoped, tag = 'scoped memory for tpu_custom_call.1']
    #allocation8 [shape = 'u8[8192]{0}', space=vmem, size = 0x2000, scoped, tag = 'input window, operand 3, single buffered']
    #allocation9 [shape = 'u8[32768]{0}', space=vmem, size = 0x8000, scoped, tag = 'input window, operand 4, single buffered']
    #allocation10 [shape = 's32[1]{0}', space=sflag, size = 0x4, scoped, tag = 'scoped memory for tpu_custom_call.1']
    #allocation11 [shape = 'u8[1024]{0}', space=vmem, size = 0x400, scoped, tag = 'output window, operand 0, single buffered']
    %11 = vsyncpa [#allocation4], 0
    %12 = vsyncpa [#allocation7], 0
    %13 = vsyncpa [#allocation10], 0
    %14 = vsyncpa [#allocation5], 0
    // Predicated region
    $region2: #{tpu_custom_call.1} parent=1 // pred_check
      _
    $region3: #{tpu_custom_call.1} parent=1 // pred_check_branch
      %16 = sbr.rel (0) target = $region5
    $region4: #{tpu_custom_call.1} parent=1 // pred_region
      %s18 = ssub.s32 512, 512
      %19 = vsyncadd [#allocation4], %s18
      %s20 = sshll.u32 [#allocation3], 4
      %s21 = int_to_ptr.vmem [resolvable:$true] %s20
      %26 = dma.hbm_to_vmem [thread:$0]  %s0, 512, %s21, [#allocation4], 128, 128, 8
    $region5: #{tpu_custom_call.1} parent=1 // pred_fallthru
      _
    // Predicated region
    $region6: #{tpu_custom_call.1} parent=1 // pred_check
      _
    $region7: #{tpu_custom_call.1} parent=1 // pred_check_branch
      %28 = sbr.rel (0) target = $region9
    $region8: #{tpu_custom_call.1} parent=1 // pred_region
      %s30 = ssub.s32 1280, 1280
      %31 = vsyncadd [#allocation7], %s30
      %s32 = sshll.u32 [#allocation6], 4
      %s33 = int_to_ptr.vmem [resolvable:$true] %s32
      %38 = dma.hbm_to_vmem [thread:$0]  %s1, 1280, %s33, [#allocation7], 320, 320, 20
    $region9: #{tpu_custom_call.1} parent=1 // pred_fallthru
      _
    // Predicated region
    $region10: #{tpu_custom_call.1} parent=1 // pred_check
      _
    $region11: #{tpu_custom_call.1} parent=1 // pred_check_branch
      %40 = sbr.rel (0) target = $region13
    $region12: #{tpu_custom_call.1} parent=1 // pred_region
      _
    $region13: #{tpu_custom_call.1} parent=1 // pred_fallthru
      _
    // Predicated region
    $region14: #{tpu_custom_call.1} parent=1 // pred_check
      _
    $region15: #{tpu_custom_call.1} parent=1 // pred_check_branch
      %42 = sbr.rel (0) target = $region17
    $region16: #{tpu_custom_call.1} parent=1 // pred_region
      %s44 = ssub.s32 256, 256
      %45 = vsyncadd [#allocation7], %s44
      %s46 = sshll.u32 [#allocation8], 4
      %s47 = int_to_ptr.vmem [resolvable:$true] %s46
      %52 = dma.hbm_to_vmem [thread:$0]  %s3, 256, %s47, [#allocation7], 128, 128, 8
    $region17: #{tpu_custom_call.1} parent=1 // pred_fallthru
      _
    // Predicated region
    $region18: #{tpu_custom_call.1} parent=1 // pred_check
      _
    $region19: #{tpu_custom_call.1} parent=1 // pred_check_branch
      %54 = sbr.rel (0) target = $region21
    $region20: #{tpu_custom_call.1} parent=1 // pred_region
      %s56 = ssub.s32 1024, 1024
      %57 = vsyncadd [#allocation10], %s56
      %s58 = sshll.u32 [#allocation9], 4
      %s59 = int_to_ptr.vmem [resolvable:$true] %s58
      %64 = dma.hbm_to_vmem [thread:$0]  %s4, 1024, %s59, [#allocation10], 64, 64, 4
    $region21: #{tpu_custom_call.1} parent=1 // pred_fallthru
      _
    // Predicated region
    $region22: #{tpu_custom_call.1} parent=1 // pred_check
      _
    $region23: #{tpu_custom_call.1} parent=1 // pred_check_branch
      %66 = sbr.rel (0) target = $region25
    $region24: #{tpu_custom_call.1} parent=1 // pred_region
      _
    $region25: #{tpu_custom_call.1} parent=1 // pred_fallthru
      _
    // Predicated region
    $region26: #{tpu_custom_call.1} parent=1 // pred_check
      _
    $region27: #{tpu_custom_call.1} parent=1 // pred_check_branch
      %68 = sbr.rel (0) target = $region29
    $region28: #{tpu_custom_call.1} parent=1 // pred_region
      %69 = dma.done [#allocation4], 512
    $region29: #{tpu_custom_call.1} parent=1 // pred_fallthru
      _
    // Predicated region
    $region30: #{tpu_custom_call.1} parent=1 // pred_check
      _
    $region31: #{tpu_custom_call.1} parent=1 // pred_check_branch
      %71 = sbr.rel (0) target = $region33
    $region32: #{tpu_custom_call.1} parent=1 // pred_region
      %72 = dma.done [#allocation7], 1280
    $region33: #{tpu_custom_call.1} parent=1 // pred_fallthru
      _
    // Predicated region
    $region34: #{tpu_custom_call.1} parent=1 // pred_check
      _
    $region35: #{tpu_custom_call.1} parent=1 // pred_check_branch
      %74 = sbr.rel (0) target = $region37
    $region36: #{tpu_custom_call.1} parent=1 // pred_region
      %75 = dma.done [#allocation7], 256
    $region37: #{tpu_custom_call.1} parent=1 // pred_fallthru
      _
    // Predicated region
    $region38: #{tpu_custom_call.1} parent=1 // pred_check
      _
    $region39: #{tpu_custom_call.1} parent=1 // pred_check_branch
      %77 = sbr.rel (0) target = $region41
    $region40: #{tpu_custom_call.1} parent=1 // pred_region
      %78 = dma.done [#allocation10], 1024
    $region41: #{tpu_custom_call.1} parent=1 // pred_fallthru
      _
    %v80 = vld [vmem:[#allocation3] sm:$0xff]
    %v81 = vld [vmem:[#allocation3 + $0x8] sm:$0xff]
    %v82 = vld [vmem:[#allocation3 + $0x10] sm:$0xff]
    %v83 = vld [vmem:[#allocation3 + $0x18] sm:$0xff]
    %v84 = vpack.c.bf16 %v81, %v80
    %v85 = vpack.c.bf16 %v83, %v82
    %v86 = vld [vmem:[#allocation6] sm:$0xf]
    %v87 = vld [vmem:[#allocation6 + $0x14] sm:$0xf]
    %v88 = vld [vmem:[#allocation6 + $0x28] sm:$0xf]
    %v89 = vld [vmem:[#allocation6 + $0x3c] sm:$0xf]
    %v94 = vunpack.c.l.b16 %v86
    %v95 = vunpack.c.l.b16 %v87
    %v96 = vunpack.c.l.b16 %v88
    %v97 = vunpack.c.l.b16 %v89
    %v98 = vpack.c.b16 %v95, %v94
    %v99 = vpack.c.b16 %v97, %v96
    %vm102 = vcmask 261120
    %v104 = vsel %vm102, %v84, 0
    %v107 = vsel %vm102, %v85, 0
    %109 = vmatprep.subr.bf16.mxu0 0
    %110 = vmatpush1.bf16.msra.mxu0 %v98
    %111 = vmatprep.subr.bf16.mxu0 0
    %112 = vmatpush1.bf16.msra.mxu0 %v99
    %113 = vmatprep.subr.bf16.mxu0 0
    %114 = vmatpush1.bf16.msra.mxu0 0
    %115 = vmatprep.subr.bf16.mxu0 0
    %116 = vmatpush1.bf16.msra.mxu0 0
    %117 = vmatprep.subr.bf16.mxu0 0
    %118 = vmatpush1.bf16.msra.mxu0 0
    %119 = vmatprep.subr.bf16.mxu0 0
    %120 = vmatpush1.bf16.msra.mxu0 0
    %121 = vmatprep.subr.bf16.mxu0 0
    %122 = vmatpush1.bf16.msra.mxu0 0
    %123 = vmatprep.subr.bf16.mxu0 0
    %124 = vmatpush1.bf16.msra.mxu0 0
    %125 = vmatprep.subr.bf16.mxu0 0
    %126 = vmatpush1.bf16.msra.mxu0 0
    %127 = vmatprep.subr.bf16.mxu0 0
    %128 = vmatpush1.bf16.msra.mxu0 0
    %129 = vmatprep.subr.bf16.mxu0 0
    %130 = vmatpush1.bf16.msra.mxu0 0
    %131 = vmatprep.subr.bf16.mxu0 0
    %132 = vmatpush1.bf16.msra.mxu0 0
    %133 = vmatprep.subr.bf16.mxu0 0
    %134 = vmatpush1.bf16.msra.mxu0 0
    %135 = vmatprep.subr.bf16.mxu0 0
    %136 = vmatpush1.bf16.msra.mxu0 0
    %137 = vmatprep.subr.bf16.mxu0 0
    %138 = vmatpush1.bf16.msra.mxu0 0
    %139 = vmatprep.subr.bf16.mxu0 0
    %140 = vmatpush1.bf16.msra.mxu0 0
    %141 = vmatprep.mubr.bf16.mxu0 0
    %142 = vmatmul.mubr.bf16.gmra.mrb[0].mxu0 %v104
    %v143 = vpop.f32.mrb[0].mxu0
    %v144 = vadd.f32 0.0, %v143
    %v145 = vpop.f32.mrb[0].mxu0
    %v146 = vpop.f32.mrb[0].mxu0
    %v147 = vadd.f32 0.0, %v146
    %v148 = vpop.f32.mrb[0].mxu0
    %149 = vmatprep.mubr.bf16.mxu0 0
    %150 = vmatmul.mubr.bf16.gmra.mrb[0].mxu0 %v107
    %v151 = vpop.f32.mrb[0].mxu0
    %v152 = vadd.f32 0.0, %v151
    %v153 = vpop.f32.mrb[0].mxu0
    %v154 = vpop.f32.mrb[0].mxu0
    %v155 = vadd.f32 0.0, %v154
    %v156 = vpop.f32.mrb[0].mxu0
    %157 = vdwg.mxu0
    %158 = vst [vmem:[#allocation2] sm:$0xff] %v144
    %159 = vst [vmem:[#allocation2 + $0x8] sm:$0xff] %v147
    %160 = vst [vmem:[#allocation2 + $0x10] sm:$0xff] %v152
    %161 = vst [vmem:[#allocation2 + $0x18] sm:$0xff] %v155
    %v162 = vld [vmem:[#allocation6 + $0x4] sm:$0xf]
    %v163 = vld [vmem:[#allocation6 + $0x18] sm:$0xf]
    %v164 = vld [vmem:[#allocation6 + $0x2c] sm:$0xf]
    %v165 = vld [vmem:[#allocation6 + $0x40] sm:$0xf]
    %v170 = vunpack.c.l.b16 %v162
    %v171 = vunpack.c.l.b16 %v163
    %v172 = vunpack.c.l.b16 %v164
    %v173 = vunpack.c.l.b16 %v165
    %v174 = vpack.c.b16 %v171, %v170
    %v175 = vpack.c.b16 %v173, %v172
    %178 = vmatprep.subr.bf16.mxu0 0
    %179 = vmatpush1.bf16.msra.mxu0 %v174
    %180 = vmatprep.subr.bf16.mxu0 0
    %181 = vmatpush1.bf16.msra.mxu0 %v175
    %182 = vmatprep.subr.bf16.mxu0 0
    %183 = vmatpush1.bf16.msra.mxu0 0
    %184 = vmatprep.subr.bf16.mxu0 0
    %185 = vmatpush1.bf16.msra.mxu0 0
    %186 = vmatprep.subr.bf16.mxu0 0
    %187 = vmatpush1.bf16.msra.mxu0 0
    %188 = vmatprep.subr.bf16.mxu0 0
    %189 = vmatpush1.bf16.msra.mxu0 0
    %190 = vmatprep.subr.bf16.mxu0 0
    %191 = vmatpush1.bf16.msra.mxu0 0
    %192 = vmatprep.subr.bf16.mxu0 0
    %193 = vmatpush1.bf16.msra.mxu0 0
    %194 = vmatprep.subr.bf16.mxu0 0
    %195 = vmatpush1.bf16.msra.mxu0 0
    %196 = vmatprep.subr.bf16.mxu0 0
    %197 = vmatpush1.bf16.msra.mxu0 0
    %198 = vmatprep.subr.bf16.mxu0 0
    %199 = vmatpush1.bf16.msra.mxu0 0
    %200 = vmatprep.subr.bf16.mxu0 0
    %201 = vmatpush1.bf16.msra.mxu0 0
    %202 = vmatprep.subr.bf16.mxu0 0
    %203 = vmatpush1.bf16.msra.mxu0 0
    %204 = vmatprep.subr.bf16.mxu0 0
    %205 = vmatpush1.bf16.msra.mxu0 0
    %206 = vmatprep.subr.bf16.mxu0 0
    %207 = vmatpush1.bf16.msra.mxu0 0
    %208 = vmatprep.subr.bf16.mxu0 0
    %209 = vmatpush1.bf16.msra.mxu0 0
    %210 = vmatprep.mubr.bf16.mxu0 0
    %211 = vmatmul.mubr.bf16.gmra.mrb[0].mxu0 %v104
    %v212 = vpop.f32.mrb[0].mxu0
    %v213 = vadd.f32 0.0, %v212
    %v214 = vpop.f32.mrb[0].mxu0
    %v215 = vpop.f32.mrb[0].mxu0
    %v216 = vadd.f32 0.0, %v215
    %v217 = vpop.f32.mrb[0].mxu0
    %218 = vmatprep.mubr.bf16.mxu0 0
    %219 = vmatmul.mubr.bf16.gmra.mrb[0].mxu0 %v107
    %v220 = vpop.f32.mrb[0].mxu0
    %v221 = vadd.f32 0.0, %v220
    %v222 = vpop.f32.mrb[0].mxu0
    %v223 = vpop.f32.mrb[0].mxu0
    %v224 = vadd.f32 0.0, %v223
    %v225 = vpop.f32.mrb[0].mxu0
    %226 = vdwg.mxu0
    %v227 = vld [vmem:[#allocation2] sm:$0xff]
    %v228 = vld [vmem:[#allocation2 + $0x8] sm:$0x7f]
    %v229 = vld [vmem:[#allocation2 + $0x10] sm:$0xff]
    %v230 = vld [vmem:[#allocation2 + $0x18] sm:$0x7f]
    %vm235 = vcmask 1046528
    %v236 = vrot.slane %v213, 1
    %v237 = vrot.slane %v216, 1
    %v238 = vsel %vm235, %v236, %v237
    %v239 = vrot.slane %v221, 1
    %v240 = vrot.slane %v224, 1
    %v241 = vsel %vm235, %v239, %v240
    %v246 = vadd.f32 %v227, %v238
    %v247 = vadd.f32 %v228, %v237
    %v248 = vadd.f32 %v229, %v241
    %v249 = vadd.f32 %v230, %v240
    %250 = vst [vmem:[#allocation2] sm:$0xff] %v246
    %251 = vst [vmem:[#allocation2 + $0x8] sm:$0x7f] %v247
    %252 = vst [vmem:[#allocation2 + $0x10] sm:$0xff] %v248
    %253 = vst [vmem:[#allocation2 + $0x18] sm:$0x7f] %v249
    %v254 = vld [vmem:[#allocation6 + $0x8] sm:$0xf]
    %v255 = vld [vmem:[#allocation6 + $0x1c] sm:$0xf]
    %v256 = vld [vmem:[#allocation6 + $0x30] sm:$0xf]
    %v257 = vld [vmem:[#allocation6 + $0x44] sm:$0xf]
    %v262 = vunpack.c.l.b16 %v254
    %v263 = vunpack.c.l.b16 %v255
    %v264 = vunpack.c.l.b16 %v256
    %v265 = vunpack.c.l.b16 %v257
    %v266 = vpack.c.b16 %v263, %v262
    %v267 = vpack.c.b16 %v265, %v264
    %270 = vmatprep.subr.bf16.mxu0 0
    %271 = vmatpush1.bf16.msra.mxu0 %v266
    %272 = vmatprep.subr.bf16.mxu0 0
    %273 = vmatpush1.bf16.msra.mxu0 %v267
    %274 = vmatprep.subr.bf16.mxu0 0
    %275 = vmatpush1.bf16.msra.mxu0 0
    %276 = vmatprep.subr.bf16.mxu0 0
    %277 = vmatpush1.bf16.msra.mxu0 0
    %278 = vmatprep.subr.bf16.mxu0 0
    %279 = vmatpush1.bf16.msra.mxu0 0
    %280 = vmatprep.subr.bf16.mxu0 0
    %281 = vmatpush1.bf16.msra.mxu0 0
    %282 = vmatprep.subr.bf16.mxu0 0
    %283 = vmatpush1.bf16.msra.mxu0 0
    %284 = vmatprep.subr.bf16.mxu0 0
    %285 = vmatpush1.bf16.msra.mxu0 0
    %286 = vmatprep.subr.bf16.mxu0 0
    %287 = vmatpush1.bf16.msra.mxu0 0
    %288 = vmatprep.subr.bf16.mxu0 0
    %289 = vmatpush1.bf16.msra.mxu0 0
    %290 = vmatprep.subr.bf16.mxu0 0
    %291 = vmatpush1.bf16.msra.mxu0 0
    %292 = vmatprep.subr.bf16.mxu0 0
    %293 = vmatpush1.bf16.msra.mxu0 0
    %294 = vmatprep.subr.bf16.mxu0 0
    %295 = vmatpush1.bf16.msra.mxu0 0
    %296 = vmatprep.subr.bf16.mxu0 0
    %297 = vmatpush1.bf16.msra.mxu0 0
    %298 = vmatprep.subr.bf16.mxu0 0
    %299 = vmatpush1.bf16.msra.mxu0 0
    %300 = vmatprep.subr.bf16.mxu0 0
    %301 = vmatpush1.bf16.msra.mxu0 0
    %302 = vmatprep.mubr.bf16.mxu0 0
    %303 = vmatmul.mubr.bf16.gmra.mrb[0].mxu0 %v104
    %v304 = vpop.f32.mrb[0].mxu0
    %v305 = vadd.f32 0.0, %v304
    %v306 = vpop.f32.mrb[0].mxu0
    %v307 = vpop.f32.mrb[0].mxu0
    %v308 = vadd.f32 0.0, %v307
    %v309 = vpop.f32.mrb[0].mxu0
    %310 = vmatprep.mubr.bf16.mxu0 0
    %311 = vmatmul.mubr.bf16.gmra.mrb[0].mxu0 %v107
    %v312 = vpop.f32.mrb[0].mxu0
    %v313 = vadd.f32 0.0, %v312
    %v314 = vpop.f32.mrb[0].mxu0
    %v315 = vpop.f32.mrb[0].mxu0
    %v316 = vadd.f32 0.0, %v315
    %v317 = vpop.f32.mrb[0].mxu0
    %318 = vdwg.mxu0
    %v319 = vld [vmem:[#allocation2] sm:$0xff]
    %v320 = vld [vmem:[#allocation2 + $0x8] sm:$0x3f]
    %v321 = vld [vmem:[#allocation2 + $0x10] sm:$0xff]
    %v322 = vld [vmem:[#allocation2 + $0x18] sm:$0x3f]
    %vm327 = vcmask 1045504
    %v328 = vrot.slane %v305, 2
    %v329 = vrot.slane %v308, 2
    %v330 = vsel %vm327, %v328, %v329
    %v331 = vrot.slane %v313, 2
    %v332 = vrot.slane %v316, 2
    %v333 = vsel %vm327, %v331, %v332
    %v338 = vadd.f32 %v319, %v330
    %v339 = vadd.f32 %v320, %v329
    %v340 = vadd.f32 %v321, %v333
    %v341 = vadd.f32 %v322, %v332
    %342 = vst [vmem:[#allocation2] sm:$0xff] %v338
    %343 = vst [vmem:[#allocation2 + $0x8] sm:$0x3f] %v339
    %344 = vst [vmem:[#allocation2 + $0x10] sm:$0xff] %v340
    %345 = vst [vmem:[#allocation2 + $0x18] sm:$0x3f] %v341
    %v346 = vld [vmem:[#allocation6 + $0xc] sm:$0xf]
    %v347 = vld [vmem:[#allocation6 + $0x20] sm:$0xf]
    %v348 = vld [vmem:[#allocation6 + $0x34] sm:$0xf]
    %v349 = vld [vmem:[#allocation6 + $0x48] sm:$0xf]
    %v354 = vunpack.c.l.b16 %v346
    %v355 = vunpack.c.l.b16 %v347
    %v356 = vunpack.c.l.b16 %v348
    %v357 = vunpack.c.l.b16 %v349
    %v358 = vpack.c.b16 %v355, %v354
    %v359 = vpack.c.b16 %v357, %v356
    %362 = vmatprep.subr.bf16.mxu0 0
    %363 = vmatpush1.bf16.msra.mxu0 %v358
    %364 = vmatprep.subr.bf16.mxu0 0
    %365 = vmatpush1.bf16.msra.mxu0 %v359
    %366 = vmatprep.subr.bf16.mxu0 0
    %367 = vmatpush1.bf16.msra.mxu0 0
    %368 = vmatprep.subr.bf16.mxu0 0
    %369 = vmatpush1.bf16.msra.mxu0 0
    %370 = vmatprep.subr.bf16.mxu0 0
    %371 = vmatpush1.bf16.msra.mxu0 0
    %372 = vmatprep.subr.bf16.mxu0 0
    %373 = vmatpush1.bf16.msra.mxu0 0
    %374 = vmatprep.subr.bf16.mxu0 0
    %375 = vmatpush1.bf16.msra.mxu0 0
    %376 = vmatprep.subr.bf16.mxu0 0
    %377 = vmatpush1.bf16.msra.mxu0 0
    %378 = vmatprep.subr.bf16.mxu0 0
    %379 = vmatpush1.bf16.msra.mxu0 0
    %380 = vmatprep.subr.bf16.mxu0 0
    %381 = vmatpush1.bf16.msra.mxu0 0
    %382 = vmatprep.subr.bf16.mxu0 0
    %383 = vmatpush1.bf16.msra.mxu0 0
    %384 = vmatprep.subr.bf16.mxu0 0
    %385 = vmatpush1.bf16.msra.mxu0 0
    %386 = vmatprep.subr.bf16.mxu0 0
    %387 = vmatpush1.bf16.msra.mxu0 0
    %388 = vmatprep.subr.bf16.mxu0 0
    %389 = vmatpush1.bf16.msra.mxu0 0
    %390 = vmatprep.subr.bf16.mxu0 0
    %391 = vmatpush1.bf16.msra.mxu0 0
    %392 = vmatprep.subr.bf16.mxu0 0
    %393 = vmatpush1.bf16.msra.mxu0 0
    %394 = vmatprep.mubr.bf16.mxu0 0
    %395 = vmatmul.mubr.bf16.gmra.mrb[0].mxu0 %v104
    %v396 = vpop.f32.mrb[0].mxu0
    %v397 = vadd.f32 0.0, %v396
    %v398 = vpop.f32.mrb[0].mxu0
    %v399 = vpop.f32.mrb[0].mxu0
    %v400 = vadd.f32 0.0, %v399
    %v401 = vpop.f32.mrb[0].mxu0
    %402 = vmatprep.mubr.bf16.mxu0 0
    %403 = vmatmul.mubr.bf16.gmra.mrb[0].mxu0 %v107
    %v404 = vpop.f32.mrb[0].mxu0
    %v405 = vadd.f32 0.0, %v404
    %v406 = vpop.f32.mrb[0].mxu0
    %v407 = vpop.f32.mrb[0].mxu0
    %v408 = vadd.f32 0.0, %v407
    %v409 = vpop.f32.mrb[0].mxu0
    %410 = vdwg.mxu0
    %v411 = vld [vmem:[#allocation2] sm:$0xff]
    %v412 = vld [vmem:[#allocation2 + $0x8] sm:$0x1f]
    %v413 = vld [vmem:[#allocation2 + $0x10] sm:$0xff]
    %v414 = vld [vmem:[#allocation2 + $0x18] sm:$0x1f]
    %vm419 = vcmask 1044480
    %v420 = vrot.slane %v397, 3
    %v421 = vrot.slane %v400, 3
    %v422 = vsel %vm419, %v420, %v421
    %v423 = vrot.slane %v405, 3
    %v424 = vrot.slane %v408, 3
    %v425 = vsel %vm419, %v423, %v424
    %v430 = vadd.f32 %v411, %v422
    %v431 = vadd.f32 %v412, %v421
    %v432 = vadd.f32 %v413, %v425
    %v433 = vadd.f32 %v414, %v424
    %434 = vst [vmem:[#allocation2] sm:$0xff] %v430
    %435 = vst [vmem:[#allocation2 + $0x8] sm:$0x1f] %v431
    %436 = vst [vmem:[#allocation2 + $0x10] sm:$0xff] %v432
    %437 = vst [vmem:[#allocation2 + $0x18] sm:$0x1f] %v433
    %v438 = vld [vmem:[#allocation6 + $0x10] sm:$0xf]
    %v439 = vld [vmem:[#allocation6 + $0x24] sm:$0xf]
    %v440 = vld [vmem:[#allocation6 + $0x38] sm:$0xf]
    %v441 = vld [vmem:[#allocation6 + $0x4c] sm:$0xf]
    %v446 = vunpack.c.l.b16 %v438
    %v447 = vunpack.c.l.b16 %v439
    %v448 = vunpack.c.l.b16 %v440
    %v449 = vunpack.c.l.b16 %v441
    %v450 = vpack.c.b16 %v447, %v446
    %v451 = vpack.c.b16 %v449, %v448
    %454 = vmatprep.subr.bf16.mxu0 0
    %455 = vmatpush1.bf16.msra.mxu0 %v450
    %456 = vmatprep.subr.bf16.mxu0 0
    %457 = vmatpush1.bf16.msra.mxu0 %v451
    %458 = vmatprep.subr.bf16.mxu0 0
    %459 = vmatpush1.bf16.msra.mxu0 0
    %460 = vmatprep.subr.bf16.mxu0 0
    %461 = vmatpush1.bf16.msra.mxu0 0
    %462 = vmatprep.subr.bf16.mxu0 0
    %463 = vmatpush1.bf16.msra.mxu0 0
    %464 = vmatprep.subr.bf16.mxu0 0
    %465 = vmatpush1.bf16.msra.mxu0 0
    %466 = vmatprep.subr.bf16.mxu0 0
    %467 = vmatpush1.bf16.msra.mxu0 0
    %468 = vmatprep.subr.bf16.mxu0 0
    %469 = vmatpush1.bf16.msra.mxu0 0
    %470 = vmatprep.subr.bf16.mxu0 0
    %471 = vmatpush1.bf16.msra.mxu0 0
    %472 = vmatprep.subr.bf16.mxu0 0
    %473 = vmatpush1.bf16.msra.mxu0 0
    %474 = vmatprep.subr.bf16.mxu0 0
    %475 = vmatpush1.bf16.msra.mxu0 0
    %476 = vmatprep.subr.bf16.mxu0 0
    %477 = vmatpush1.bf16.msra.mxu0 0
    %478 = vmatprep.subr.bf16.mxu0 0
    %479 = vmatpush1.bf16.msra.mxu0 0
    %480 = vmatprep.subr.bf16.mxu0 0
    %481 = vmatpush1.bf16.msra.mxu0 0
    %482 = vmatprep.subr.bf16.mxu0 0
    %483 = vmatpush1.bf16.msra.mxu0 0
    %484 = vmatprep.subr.bf16.mxu0 0
    %485 = vmatpush1.bf16.msra.mxu0 0
    %486 = vmatprep.mubr.bf16.mxu0 0
    %487 = vmatmul.mubr.bf16.gmra.mrb[0].mxu0 %v104
    %v488 = vpop.f32.mrb[0].mxu0
    %v489 = vadd.f32 0.0, %v488
    %v490 = vpop.f32.mrb[0].mxu0
    %v491 = vpop.f32.mrb[0].mxu0
    %v492 = vadd.f32 0.0, %v491
    %v493 = vpop.f32.mrb[0].mxu0
    %494 = vmatprep.mubr.bf16.mxu0 0
    %495 = vmatmul.mubr.bf16.gmra.mrb[0].mxu0 %v107
    %v496 = vpop.f32.mrb[0].mxu0
    %v497 = vadd.f32 0.0, %v496
    %v498 = vpop.f32.mrb[0].mxu0
    %v499 = vpop.f32.mrb[0].mxu0
    %v500 = vadd.f32 0.0, %v499
    %v501 = vpop.f32.mrb[0].mxu0
    %502 = vdwg.mxu0
    %v503 = vld [vmem:[#allocation2] sm:$0xff]
    %v504 = vld [vmem:[#allocation2 + $0x8] sm:$0xf]
    %v505 = vld [vmem:[#allocation2 + $0x10] sm:$0xff]
    %v506 = vld [vmem:[#allocation2 + $0x18] sm:$0xf]
    %vm511 = vcmask 1043456
    %v512 = vrot.slane %v489, 4
    %v513 = vrot.slane %v492, 4
    %v514 = vsel %vm511, %v512, %v513
    %v515 = vrot.slane %v497, 4
    %v516 = vrot.slane %v500, 4
    %v517 = vsel %vm511, %v515, %v516
    %v522 = vadd.f32 %v503, %v514
    %v523 = vadd.f32 %v504, %v513
    %v524 = vadd.f32 %v505, %v517
    %v525 = vadd.f32 %v506, %v516
    %526 = vst [vmem:[#allocation2] sm:$0xff] %v522
    %527 = vst [vmem:[#allocation2 + $0x8] sm:$0xf] %v523
    %528 = vst [vmem:[#allocation2 + $0x10] sm:$0xff] %v524
    %529 = vst [vmem:[#allocation2 + $0x18] sm:$0xf] %v525
    %v530 = vld [vmem:[#allocation2] sm:$0xff]
    %v531 = vld [vmem:[#allocation2 + $0x8] sm:$0xff]
    %v532 = vld [vmem:[#allocation2 + $0x10] sm:$0xff]
    %v533 = vld [vmem:[#allocation2 + $0x18] sm:$0xff]
    %v534 = vld [vmem:[%s2] sm:$0x1]
    %v536 = vlaneseq
    %v537 = vshrl.u32 %v536, 7
    %v538 = vsub.s32 0, %v537
    %v539 = vrot.slane %v534, %v538
    %v541 = vadd.f32 %v530, %v539
    %v542 = vadd.f32 %v531, %v539
    %v543 = vadd.f32 %v532, %v539
    %v544 = vadd.f32 %v533, %v539
    %v545 = vmax.f32 %v541, 0.0
    %v546 = vmax.f32 %v542, 0.0
    %v547 = vmax.f32 %v543, 0.0
    %v548 = vmax.f32 %v544, 0.0
    %v549 = vld [vmem:[#allocation8] sm:$0xff]
    %v550 = vld [vmem:[#allocation8 + $0x8] sm:$0xff]
    %v551 = vmul.f32 %v545, %v549
    %v552 = vmul.f32 %v546, %v550
    %v553 = vmul.f32 %v547, %v549
    %v554 = vmul.f32 %v548, %v550
    %v555 = vmax.f32 %v551, %v552
    %v556 = vrot.slane %v555, 4
    %v557 = vmax.f32 %v555, %v556
    %v558 = vrot.slane %v557, 2
    %v559 = vmax.f32 %v557, %v558
    %v560 = vrot.slane %v559, 1
    %v561 = vmax.f32 %v559, %v560
    %v562 = vmax.f32 %v553, %v554
    %v563 = vrot.slane %v562, 4
    %v564 = vmax.f32 %v562, %v563
    %v565 = vrot.slane %v564, 2
    %v566 = vmax.f32 %v564, %v565
    %v567 = vrot.slane %v566, 1
    %v568 = vmax.f32 %v566, %v567
    %v569 = vpack.c.bf16 %v561, %v561
    %v570 = vpack.c.bf16 %v568, %v568
    %v571 = vld [vmem:[#allocation9] sm:$0xf]
    %v572 = vld [vmem:[#allocation9 + $0x4] sm:$0xf]
    %v573 = vld [vmem:[#allocation9 + $0x8] sm:$0xf]
    %v574 = vld [vmem:[#allocation9 + $0xc] sm:$0xf]
    %v575 = vld [vmem:[#allocation9 + $0x10] sm:$0xf]
    %v576 = vld [vmem:[#allocation9 + $0x14] sm:$0xf]
    %v577 = vld [vmem:[#allocation9 + $0x18] sm:$0xf]
    %v578 = vld [vmem:[#allocation9 + $0x1c] sm:$0xf]
    %v579 = vld [vmem:[#allocation9 + $0x20] sm:$0xf]
    %v580 = vld [vmem:[#allocation9 + $0x24] sm:$0xf]
    %v581 = vld [vmem:[#allocation9 + $0x28] sm:$0xf]
    %v582 = vld [vmem:[#allocation9 + $0x2c] sm:$0xf]
    %v583 = vld [vmem:[#allocation9 + $0x30] sm:$0xf]
    %v584 = vld [vmem:[#allocation9 + $0x34] sm:$0xf]
    %v585 = vld [vmem:[#allocation9 + $0x38] sm:$0xf]
    %v586 = vld [vmem:[#allocation9 + $0x3c] sm:$0xf]
    %v587 = vld [vmem:[%s5] sm:$0x1]
    %v589 = vlaneseq
    %v590 = vshrl.u32 %v589, 7
    %v591 = vsub.s32 0, %v590
    %v592 = vrot.slane %v587, %v591
    %v596 = vunpack.c.l.b16 %v569
    %v597 = vunpack.c.l.b16 %v570
    %vm598 = vcmask 1041409
    %v599 = vsel %vm598, %v597, %v596
    %v600 = vpack.c.b16 %v599, %v599
    %v618 = vunpack.c.l.b16 %v571
    %v619 = vunpack.c.l.b16 %v572
    %v620 = vunpack.c.l.b16 %v573
    %v621 = vunpack.c.l.b16 %v574
    %v622 = vunpack.c.l.b16 %v575
    %v623 = vunpack.c.l.b16 %v576
    %v624 = vunpack.c.l.b16 %v577
    %v625 = vunpack.c.l.b16 %v578
    %v626 = vunpack.c.l.b16 %v579
    %v627 = vunpack.c.l.b16 %v580
    %v628 = vunpack.c.l.b16 %v581
    %v629 = vunpack.c.l.b16 %v582
    %v630 = vunpack.c.l.b16 %v583
    %v631 = vunpack.c.l.b16 %v584
    %v632 = vunpack.c.l.b16 %v585
    %v633 = vunpack.c.l.b16 %v586
    %v634 = vpack.c.b16 %v619, %v618
    %v635 = vpack.c.b16 %v621, %v620
    %v636 = vpack.c.b16 %v623, %v622
    %v637 = vpack.c.b16 %v625, %v624
    %v638 = vpack.c.b16 %v627, %v626
    %v639 = vpack.c.b16 %v629, %v628
    %v640 = vpack.c.b16 %v631, %v630
    %v641 = vpack.c.b16 %v633, %v632
    %650 = vmatprep.subr.bf16.mxu0 0
    %651 = vmatpush1.bf16.msra.mxu0 %v634
    %652 = vmatprep.subr.bf16.mxu0 0
    %653 = vmatpush1.bf16.msra.mxu0 %v635
    %654 = vmatprep.subr.bf16.mxu0 0
    %655 = vmatpush1.bf16.msra.mxu0 %v636
    %656 = vmatprep.subr.bf16.mxu0 0
    %657 = vmatpush1.bf16.msra.mxu0 %v637
    %658 = vmatprep.subr.bf16.mxu0 0
    %659 = vmatpush1.bf16.msra.mxu0 %v638
    %660 = vmatprep.subr.bf16.mxu0 0
    %661 = vmatpush1.bf16.msra.mxu0 %v639
    %662 = vmatprep.subr.bf16.mxu0 0
    %663 = vmatpush1.bf16.msra.mxu0 %v640
    %664 = vmatprep.subr.bf16.mxu0 0
    %665 = vmatpush1.bf16.msra.mxu0 %v641
    %666 = vmatprep.subr.bf16.mxu0 0
    %667 = vmatpush1.bf16.msra.mxu0 0
    %668 = vmatprep.subr.bf16.mxu0 0
    %669 = vmatpush1.bf16.msra.mxu0 0
    %670 = vmatprep.subr.bf16.mxu0 0
    %671 = vmatpush1.bf16.msra.mxu0 0
    %672 = vmatprep.subr.bf16.mxu0 0
    %673 = vmatpush1.bf16.msra.mxu0 0
    %674 = vmatprep.subr.bf16.mxu0 0
    %675 = vmatpush1.bf16.msra.mxu0 0
    %676 = vmatprep.subr.bf16.mxu0 0
    %677 = vmatpush1.bf16.msra.mxu0 0
    %678 = vmatprep.subr.bf16.mxu0 0
    %679 = vmatpush1.bf16.msra.mxu0 0
    %680 = vmatprep.subr.bf16.mxu0 0
    %681 = vmatpush1.bf16.msra.mxu0 0
    %682 = vmatprep.mubr.bf16.mxu0 0
    %683 = vmatmul.mubr.bf16.gmra.mrb[0].mxu0 %v600
    %v684 = vpop.f32.mrb[0].mxu0
    %v685 = vadd.f32 %v592, %v684
    %v686 = vpop.f32.mrb[0].mxu0
    %v687 = vpop.f32.mrb[0].mxu0
    %v688 = vpop.f32.mrb[0].mxu0
    %689 = vdwg.mxu0
    %690 = vst [vmem:[#allocation11] sm:$0x3] %v685
    // Predicated region
    $region42: #{tpu_custom_call.1} parent=1 // pred_check
      _
    $region43: #{tpu_custom_call.1} parent=1 // pred_check_branch
      %692 = sbr.rel (0) target = $region45
    $region44: #{tpu_custom_call.1} parent=1 // pred_region
      %s694 = ssub.s32 32, 32
      %695 = vsyncadd [#allocation5], %s694
      %s697 = sshll.u32 [#allocation11], 4
      %s698 = int_to_ptr.vmem [resolvable:$true] %s697
      %700 = dma.vmem_to_hbm [thread:$0]  %s698, 32, %s6, [#allocation5]
    $region45: #{tpu_custom_call.1} parent=1 // pred_fallthru
      _
    // Predicated region
    $region46: #{tpu_custom_call.1} parent=1 // pred_check
      _
    $region47: #{tpu_custom_call.1} parent=1 // pred_check_branch
      %702 = sbr.rel (0) target = $region49
    $region48: #{tpu_custom_call.1} parent=1 // pred_region
      %703 = dma.done [#allocation5], 32
    $region49: #{tpu_custom_call.1} parent=1 // pred_fallthru
      _
    %704 = vsyncpa [#allocation4], 1
    %705 = vsyncpa [#allocation7], 1
    %706 = vsyncpa [#allocation10], 1
    %707 = vsyncpa [#allocation5], 1

</llo_original>
